<compile_context>
chip_gen: v7x
topology: tpu7x:2x2x1
jax: 0.10.0
libtpu: 0.0.40
codegen_flags: <defaults>
</compile_context>

<pallas_src>
import functools

import jax
import jax.numpy as jnp
from jax.experimental import pallas as pl
from jax.experimental.pallas import tpu as pltpu


def _decoder_kernel(a_ref, b_ref, o_ref, *, tn: int, resident_rhs: bool,
                    bf16_operands: bool):
    """sigmoid(A_tile @ B_tile.T) for one (tm, tn) output block.

    a_ref: (tm, D)   row tile of inp
    b_ref: (N_pad, D) fully-resident inp (resident_rhs=True) or (tn, D) tile
    o_ref: (tm, tn)  lane-dense output block
    """
    a = a_ref[...]
    if resident_rhs:
        j = pl.program_id(1)
        start = pl.multiple_of(j * tn, tn)          # tn is a multiple of 128
        b = b_ref[pl.ds(start, tn), :]
    else:
        b = b_ref[...]
    if bf16_operands:
        a = a.astype(jnp.bfloat16)
        b = b.astype(jnp.bfloat16)
    # Contract on the feature dim of both operands -> no in-kernel transpose.
    logits = jax.lax.dot_general(
        a, b,
        dimension_numbers=(((1,), (1,)), ((), ())),
        preferred_element_type=jnp.float32,
    )
    # sigmoid(x) = 0.5 * (1 + tanh(0.5 x)): one EUP transcendental per element.
    o_ref[...] = (0.5 * (jnp.tanh(0.5 * logits) + 1.0)).astype(o_ref.dtype)


def _sublane_granule(dtype) -> int:
    """Minimum packed sublane tile for a dtype: 8 (32-bit), 16 (16-bit), 32 (8-bit)."""
    return max(8, 32 // jnp.dtype(dtype).itemsize)


def _pick_tile(n: int, target: int, granules) -> int:
    """Largest multiple of a preferred granule that divides n and is <= target.

    `granules` is a preference-ordered tuple; falls back to n (full extent,
    always legal) if no granule admits a divisor.
    """
    for g in granules:
        t = (min(target, n) // g) * g
        for cand in range(t, 0, -g):
            if n % cand == 0:
                return cand
    return n


# Hold the rhs fully VMEM-resident (single DMA) when one copy is at most this big.
_RESIDENT_RHS_MAX_BYTES = 4 * 1024 * 1024
# Conservative per-kernel VMEM ceiling: well under v7x's 64 MiB physical VMEM.
_VMEM_CEILING_BYTES = 40 * 1024 * 1024


def inner_product_decoder(inp: jax.Array, *, tm: int = 512, tn: int = 512,
                          out_dtype=None, bf16_operands: bool = False) -> jax.Array:
    """sigmoid(inp @ inp.T) via a Pallas TPU kernel.

    inp: (N, D) float array of node embeddings.
    tm / tn: target row / column tile sizes for the (N, N) output.
    out_dtype: output dtype. Defaults to inp.dtype (exact module semantics).
        Strongly recommended: jnp.bfloat16 (halves the dominant N^2 HBM
        writeback; probabilities lie in [0,1]), or float8_e4m3fn on v7x.
    bf16_operands: cast lhs/rhs tiles to bf16 before the MXU (f32 accumulation);
        free bandwidth/vreg win on v5e's bf16-native MXU, tiny accuracy cost.
    """
    # Dropout with p=0.0 is the identity, so it is elided.
    # TODO(synk): for nonzero dropout in training mode, seed pltpu.prng_seed +
    # pltpu.stateful_bernoulli inside the kernel.
    N, D = inp.shape
    out_dtype = inp.dtype if out_dtype is None else jnp.dtype(out_dtype)
    in_it = jnp.dtype(inp.dtype).itemsize
    out_it = jnp.dtype(out_dtype).itemsize

    # Pad N to a multiple of 128 so every output block is lane-dense (unmasked
    # vst); the padded rows/cols are sliced off after the call.
    N_pad = ((N + 127) // 128) * 128
    inp_p = inp if N_pad == N else jnp.pad(inp, ((0, N_pad - N), (0, 0)))

    # dtype-aware sublane granule for the output block's second-to-last dim
    # (and the lhs tile); prefer 256-multiples for clean MXU M passes.
    granule_m = max(_sublane_granule(inp.dtype), _sublane_granule(out_dtype))
    tm = _pick_tile(N_pad, tm, (256, granule_m))
    tn = _pick_tile(N_pad, tn, (128,))

    # Keep the whole (padded) embedding matrix VMEM-resident as the rhs when it
    # is small: its constant index_map means it is DMA'd exactly once.
    resident_rhs = (N_pad * D * in_it) <= _RESIDENT_RHS_MAX_BYTES
    rhs_block_bytes = (N_pad if resident_rhs else tn) * D * in_it

    # VMEM footprint: double-buffered lhs/rhs/out blocks plus the f32
    # logits/probs temporaries that exist before the cast to out_dtype.
    vmem_bytes = (2 * tm * D * in_it
                  + 2 * rhs_block_bytes
                  + 2 * tm * tn * out_it
                  + 2 * tm * tn * 4)
    assert vmem_bytes <= _VMEM_CEILING_BYTES, (
        f"tile configuration needs ~{vmem_bytes} B of VMEM; shrink tm/tn")
    vmem_limit = min(48 * 1024 * 1024,
                     max(32 * 1024 * 1024, int(vmem_bytes * 3 // 2)))

    grid = (N_pad // tm, N_pad // tn)
    kernel = functools.partial(_decoder_kernel, tn=tn,
                               resident_rhs=resident_rhs,
                               bf16_operands=bf16_operands)

    if resident_rhs:
        rhs_spec = pl.BlockSpec((N_pad, D), lambda i, j: (0, 0))   # fetched once
    else:
        rhs_spec = pl.BlockSpec((tn, D), lambda i, j: (j, 0))

    # NOTE: the output is symmetric, but an upper-triangle-only pass would not
    # help here: the bound resource is the dense N^2 HBM writeback, not MXU/EUP.
    out_pad = pl.pallas_call(
        kernel,
        out_shape=jax.ShapeDtypeStruct((N_pad, N_pad), out_dtype),
        grid_spec=pltpu.PrefetchScalarGridSpec(
            num_scalar_prefetch=0,
            grid=grid,
            in_specs=[
                pl.BlockSpec((tm, D), lambda i, j: (i, 0)),  # row tile of inp
                rhs_spec,                                    # rhs (resident or tiled)
            ],
            out_specs=pl.BlockSpec((tm, tn), lambda i, j: (i, j)),
        ),
        compiler_params=pltpu.CompilerParams(
            dimension_semantics=("parallel", "parallel"),
            vmem_limit_bytes=vmem_limit,
        ),
        cost_estimate=pl.CostEstimate(
            flops=2 * N_pad * N_pad * D,
            transcendentals=N_pad * N_pad,
            bytes_accessed=2 * N_pad * D * in_it + N_pad * N_pad * out_it,
        ),
    )(inp_p, inp_p)

    return out_pad if N_pad == N else out_pad[:N, :N]


def inner_product_decoder_ref(inp: jax.Array) -> jax.Array:
    """Pure-JAX reference matching the PyTorch forward."""
    return jax.nn.sigmoid(inp @ inp.T)


if __name__ == "__main__":
    key = jax.random.PRNGKey(0)

    # 1) Small demo shape: N=128 nodes, D=32 latent dims (module has no weights;
    #    act=sigmoid, dropout=0.0 as in __init__ defaults). Single block.
    N, D = 128, 32
    inp = jax.random.normal(key, (N, D), dtype=jnp.float32)
    out = jax.block_until_ready(inner_product_decoder(inp))
    ref = inner_product_decoder_ref(inp)
    assert out.shape == (N, N)
    assert jnp.allclose(out, ref, atol=1e-5, rtol=1e-5), "mismatch (N=128)"

    # 2) Non-128-multiple N: exercises the pad-to-128 / slice-back path so the
    #    stores stay lane-dense.
    N1, D1 = 200, 32
    inp1 = jax.random.normal(jax.random.PRNGKey(1), (N1, D1), dtype=jnp.float32)
    out1 = jax.block_until_ready(inner_product_decoder(inp1))
    ref1 = inner_product_decoder_ref(inp1)
    assert out1.shape == (N1, N1)
    assert jnp.allclose(out1, ref1, atol=1e-5, rtol=1e-5), "mismatch (N=200)"

    # 3) Larger shape with a >1 grid, resident rhs, and the recommended bf16
    #    output (halves the dominant N^2 writeback stream).
    N2, D2 = 512, 32
    inp2 = jax.random.normal(jax.random.PRNGKey(2), (N2, D2), dtype=jnp.float32)
    out2 = jax.block_until_ready(
        inner_product_decoder(inp2, tm=256, tn=256, out_dtype=jnp.bfloat16))
    ref2 = inner_product_decoder_ref(inp2)
    assert out2.shape == (N2, N2)
    assert jnp.allclose(out2.astype(jnp.float32), ref2, atol=5e-3), "mismatch (N=512, bf16)"

    print("KERNEL_OK")
</pallas_src>

<mosaic_0001>
module attributes {stable_mosaic.version = 11 : i64} {
  func.func @_decoder_kernel(%arg0: i32, %arg1: i32, %arg2: memref<128x32xf32, #tpu.memory_space<vmem>>, %arg3: memref<128x32xf32, #tpu.memory_space<vmem>>, %arg4: memref<128x128xf32, #tpu.memory_space<vmem>>) attributes {dimension_semantics = [#tpu.dimension_semantics<parallel>, #tpu.dimension_semantics<parallel>], iteration_bounds = array<i64: 1, 1>, scalar_prefetch = 0 : i64, scratch_operands = 0 : i64, tpu.core_type = #tpu.core_type<tc>, window_params = [{transform_indices = @transform_0, window_bounds = array<i64: 128, 32>}, {pipeline_mode = #tpu.pipeline_mode<synchronous>, transform_indices = @transform_1, window_bounds = array<i64: 128, 32>}, {transform_indices = @transform_2, window_bounds = array<i64: 128, 128>}]} {
    %c0 = arith.constant 0 : index
    %c0_0 = arith.constant 0 : index
    %0 = vector.load %arg2[%c0, %c0_0] : memref<128x32xf32, #tpu.memory_space<vmem>>, vector<128x32xf32>
    %c128_i32 = arith.constant 128 : i32
    %1 = arith.muli %arg1, %c128_i32 : i32
    %2 = tpu.assume_multiple %1, 128 : i32
    %3 = arith.index_cast %2 : i32 to index
    %c0_1 = arith.constant 0 : index
    %4 = vector.load %arg3[%3, %c0_1] : memref<128x32xf32, #tpu.memory_space<vmem>>, vector<128x32xf32>
    %cst = arith.constant dense<0.000000e+00> : vector<128x128xf32>
    %5 = tpu.matmul %0, %4, %cst {dimension_numbers = #tpu.dot_dimension_numbers<[1], [1], [0], [0], [0, 0, 1, 0], [], []>} : vector<128x32xf32>, vector<128x32xf32>, vector<128x128xf32> -> vector<128x128xf32>
    %cst_2 = arith.constant 5.000000e-01 : f32
    %6 = vector.broadcast %cst_2 : f32 to vector<128x128xf32>
    %7 = arith.mulf %6, %5 : vector<128x128xf32>
    %8 = math.tanh %7 : vector<128x128xf32>
    %cst_3 = arith.constant 1.000000e+00 : f32
    %9 = vector.broadcast %cst_3 : f32 to vector<128x128xf32>
    %10 = arith.addf %8, %9 : vector<128x128xf32>
    %cst_4 = arith.constant 5.000000e-01 : f32
    %11 = vector.broadcast %cst_4 : f32 to vector<128x128xf32>
    %12 = arith.mulf %11, %10 : vector<128x128xf32>
    %c0_5 = arith.constant 0 : index
    %c0_6 = arith.constant 0 : index
    %13 = vector.load %arg4[%c0_5, %c0_6] : memref<128x128xf32, #tpu.memory_space<vmem>>, vector<128x128xf32>
    tpu.vector_store %arg4[%c0_5, %c0_6], %12 {strides = array<i32>} : memref<128x128xf32, #tpu.memory_space<vmem>>, vector<128x128xf32>,
    return
  }
  func.func @transform_0(%arg0: i32, %arg1: i32) -> (i32, i32) {
    %c0_i32 = arith.constant 0 : i32
    %c0_i32_0 = arith.constant 0 : i32
    return %arg0, %c0_i32 : i32, i32
  }
  func.func @transform_1(%arg0: i32, %arg1: i32) -> (i32, i32) {
    %c0_i32 = arith.constant 0 : i32
    %c0_i32_0 = arith.constant 0 : i32
    %c0_i32_1 = arith.constant 0 : i32
    return %c0_i32, %c0_i32_0 : i32, i32
  }
  func.func @transform_2(%arg0: i32, %arg1: i32) -> (i32, i32) {
    %c0_i32 = arith.constant 0 : i32
    return %arg0, %arg1 : i32, i32
  }
}

</mosaic_0001>

<llo_original>
// kernel: tpu_custom_call.1
$region0: #{tpu_custom_call.1}
  #allocation0 [shape = 'u32[]', space=smem, size = 0x4, offset = 0x4, fixed_abs, tag = 'smem constant byte address 0x4 - core index']
  #allocation1 [shape = 'u32[144,128]{1,0:T(1,128)}', space=vmem, size = 0x12000, scoped, tag = 'internal scratch']
  %s0 = inlined_call_operand.vmem [shape: f32[128,32], index: 0, kind: input, shape index: {}]
  %s1 = inlined_call_operand.vmem [shape: f32[128,32], index: 1, kind: input, shape index: {}]
  %s2 = inlined_call_operand.hbm [shape: f32[128,128], index: 2, kind: output, shape index: {}]
  %s3 = sld [smem:[#allocation0]]
  $region18: #{tpu_custom_call.1} parent=0
    _
  %s5 = ssub.s32 1, %s3
  %s6 = scalar_select 0, %s5, %s3
  $region1: #{tpu_custom_call.1} parent=0
    #allocation2 [shape = 'u8[65536]{0}', space=vmem, size = 0x10000, scoped, tag = 'output window, operand 0, single buffered']
    #allocation3 [shape = 's32[1]{0}', space=sflag, size = 0x4, scoped, tag = 'scoped memory for tpu_custom_call.1']
    %7 = vsyncpa [#allocation3], 0
    // Predicated region
    $region2: #{tpu_custom_call.1} parent=1 // pred_check
      _
    $region3: #{tpu_custom_call.1} parent=1 // pred_check_branch
      %9 = sbr.rel (0) target = $region5
    $region4: #{tpu_custom_call.1} parent=1 // pred_region
      _
    $region5: #{tpu_custom_call.1} parent=1 // pred_fallthru
      _
    // Predicated region
    $region6: #{tpu_custom_call.1} parent=1 // pred_check
      _
    $region7: #{tpu_custom_call.1} parent=1 // pred_check_branch
      %11 = sbr.rel (0) target = $region9
    $region8: #{tpu_custom_call.1} parent=1 // pred_region
      _
    $region9: #{tpu_custom_call.1} parent=1 // pred_fallthru
      _
    %v12 = vld [vmem:[%s0] sm:$0xff]
    %v13 = vld [vmem:[%s0 + $0x8] sm:$0xff]
    %v14 = vld [vmem:[%s0 + $0x10] sm:$0xff]
    %v15 = vld [vmem:[%s0 + $0x18] sm:$0xff]
    %v16 = vld [vmem:[%s0 + $0x20] sm:$0xff]
    %v17 = vld [vmem:[%s0 + $0x28] sm:$0xff]
    %v18 = vld [vmem:[%s0 + $0x30] sm:$0xff]
    %v19 = vld [vmem:[%s0 + $0x38] sm:$0xff]
    %v20 = vld [vmem:[%s0 + $0x40] sm:$0xff]
    %v21 = vld [vmem:[%s0 + $0x48] sm:$0xff]
    %v22 = vld [vmem:[%s0 + $0x50] sm:$0xff]
    %v23 = vld [vmem:[%s0 + $0x58] sm:$0xff]
    %v24 = vld [vmem:[%s0 + $0x60] sm:$0xff]
    %v25 = vld [vmem:[%s0 + $0x68] sm:$0xff]
    %v26 = vld [vmem:[%s0 + $0x70] sm:$0xff]
    %v27 = vld [vmem:[%s0 + $0x78] sm:$0xff]
    %s28 = smul.u32 0, 128
    %s29 = scalar_lea.vmem %s1, %s28
    %v30 = vld [vmem:[%s29] sm:$0xff]
    %v31 = vld [vmem:[%s29 + $0x8] sm:$0xff]
    %v32 = vld [vmem:[%s29 + $0x10] sm:$0xff]
    %v33 = vld [vmem:[%s29 + $0x18] sm:$0xff]
    %v34 = vld [vmem:[%s29 + $0x20] sm:$0xff]
    %v35 = vld [vmem:[%s29 + $0x28] sm:$0xff]
    %v36 = vld [vmem:[%s29 + $0x30] sm:$0xff]
    %v37 = vld [vmem:[%s29 + $0x38] sm:$0xff]
    %v38 = vld [vmem:[%s29 + $0x40] sm:$0xff]
    %v39 = vld [vmem:[%s29 + $0x48] sm:$0xff]
    %v40 = vld [vmem:[%s29 + $0x50] sm:$0xff]
    %v41 = vld [vmem:[%s29 + $0x58] sm:$0xff]
    %v42 = vld [vmem:[%s29 + $0x60] sm:$0xff]
    %v43 = vld [vmem:[%s29 + $0x68] sm:$0xff]
    %v44 = vld [vmem:[%s29 + $0x70] sm:$0xff]
    %v45 = vld [vmem:[%s29 + $0x78] sm:$0xff]
    %vm46 = vcmask 261120
    %v48 = vsel %vm46, %v12, 0
    %v51 = vsel %vm46, %v13, 0
    %v54 = vsel %vm46, %v14, 0
    %v57 = vsel %vm46, %v15, 0
    %v60 = vsel %vm46, %v16, 0
    %v63 = vsel %vm46, %v17, 0
    %v66 = vsel %vm46, %v18, 0
    %v69 = vsel %vm46, %v19, 0
    %v72 = vsel %vm46, %v20, 0
    %v75 = vsel %vm46, %v21, 0
    %v78 = vsel %vm46, %v22, 0
    %v81 = vsel %vm46, %v23, 0
    %v84 = vsel %vm46, %v24, 0
    %v87 = vsel %vm46, %v25, 0
    %v90 = vsel %vm46, %v26, 0
    %v93 = vsel %vm46, %v27, 0
    %v96 = vsel %vm46, %v30, 0
    %v99 = vsel %vm46, %v31, 0
    %v102 = vsel %vm46, %v32, 0
    %v105 = vsel %vm46, %v33, 0
    %v108 = vsel %vm46, %v34, 0
    %v111 = vsel %vm46, %v35, 0
    %v114 = vsel %vm46, %v36, 0
    %v117 = vsel %vm46, %v37, 0
    %v120 = vsel %vm46, %v38, 0
    %v123 = vsel %vm46, %v39, 0
    %v126 = vsel %vm46, %v40, 0
    %v129 = vsel %vm46, %v41, 0
    %v132 = vsel %vm46, %v42, 0
    %v135 = vsel %vm46, %v43, 0
    %v138 = vsel %vm46, %v44, 0
    %v141 = vsel %vm46, %v45, 0
    %143 = vmatprep.subr.mxu0 0.0
    %144 = vmatpush1.xpose.msra.mxu0 %v96
    %145 = vmatprep.subr.mxu0 0.0
    %146 = vmatpush1.xpose.msra.mxu0 %v99
    %147 = vmatprep.subr.mxu0 0.0
    %148 = vmatpush1.xpose.msra.mxu0 %v102
    %149 = vmatprep.subr.mxu0 0.0
    %150 = vmatpush1.xpose.msra.mxu0 %v105
    %151 = vmatprep.subr.mxu0 0.0
    %152 = vmatpush1.xpose.msra.mxu0 %v108
    %153 = vmatprep.subr.mxu0 0.0
    %154 = vmatpush1.xpose.msra.mxu0 %v111
    %155 = vmatprep.subr.mxu0 0.0
    %156 = vmatpush1.xpose.msra.mxu0 %v114
    %157 = vmatprep.subr.mxu0 0.0
    %158 = vmatpush1.xpose.msra.mxu0 %v117
    %159 = vmatprep.subr.mxu0 0.0
    %160 = vmatpush1.xpose.msra.mxu0 %v120
    %161 = vmatprep.subr.mxu0 0.0
    %162 = vmatpush1.xpose.msra.mxu0 %v123
    %163 = vmatprep.subr.mxu0 0.0
    %164 = vmatpush1.xpose.msra.mxu0 %v126
    %165 = vmatprep.subr.mxu0 0.0
    %166 = vmatpush1.xpose.msra.mxu0 %v129
    %167 = vmatprep.subr.mxu0 0.0
    %168 = vmatpush1.xpose.msra.mxu0 %v132
    %169 = vmatprep.subr.mxu0 0.0
    %170 = vmatpush1.xpose.msra.mxu0 %v135
    %171 = vmatprep.subr.mxu0 0.0
    %172 = vmatpush1.xpose.msra.mxu0 %v138
    %173 = vmatprep.subr.mxu0 0.0
    %174 = vmatpush1.xpose.msra.mxu0 %v141
    %175 = vmatprep.subr.mxu0 0.0
    %176 = vmatpush1.xpose.msra.mxu0 0.0
    %177 = vmatprep.subr.mxu0 0.0
    %178 = vmatpush1.xpose.msra.mxu0 0.0
    %179 = vmatprep.subr.mxu0 0.0
    %180 = vmatpush1.xpose.msra.mxu0 0.0
    %181 = vmatprep.subr.mxu0 0.0
    %182 = vmatpush1.xpose.msra.mxu0 0.0
    %183 = vmatprep.subr.mxu0 0.0
    %184 = vmatpush1.xpose.msra.mxu0 0.0
    %185 = vmatprep.subr.mxu0 0.0
    %186 = vmatpush1.xpose.msra.mxu0 0.0
    %187 = vmatprep.subr.mxu0 0.0
    %188 = vmatpush1.xpose.msra.mxu0 0.0
    %189 = vmatprep.subr.mxu0 0.0
    %190 = vmatpush1.xpose.msra.mxu0 0.0
    %191 = vmatprep.subr.mxu0 0.0
    %192 = vmatpush1.xpose.msra.mxu0 0.0
    %193 = vmatprep.subr.mxu0 0.0
    %194 = vmatpush1.xpose.msra.mxu0 0.0
    %195 = vmatprep.subr.mxu0 0.0
    %196 = vmatpush1.xpose.msra.mxu0 0.0
    %197 = vmatprep.subr.mxu0 0.0
    %198 = vmatpush1.xpose.msra.mxu0 0.0
    %199 = vmatprep.subr.mxu0 0.0
    %200 = vmatpush1.xpose.msra.mxu0 0.0
    %201 = vmatprep.subr.mxu0 0.0
    %202 = vmatpush1.xpose.msra.mxu0 0.0
    %203 = vmatprep.subr.mxu0 0.0
    %204 = vmatpush1.xpose.msra.mxu0 0.0
    %205 = vmatprep.subr.mxu0 0.0
    %206 = vmatpush1.xpose.msra.mxu0 0.0
    %207 = vmatprep.mubr.f32.mxu0 0.0
    %208 = vmatmul.mubr.f32.gmra.mrb[0].mxu0 %v48
    %v209 = vpop.f32.mrb[0].mxu0
    %v210 = vadd.f32 0.0, %v209
    %v211 = vpop.f32.mrb[0].mxu0
    %212 = vmatprep.mubr.f32.mxu0 0.0
    %213 = vmatmul.mubr.f32.gmra.mrb[0].mxu0 %v51
    %v214 = vpop.f32.mrb[0].mxu0
    %v215 = vadd.f32 0.0, %v214
    %v216 = vpop.f32.mrb[0].mxu0
    %217 = vmatprep.mubr.f32.mxu0 0.0
    %218 = vmatmul.mubr.f32.gmra.mrb[0].mxu0 %v54
    %v219 = vpop.f32.mrb[0].mxu0
    %v220 = vadd.f32 0.0, %v219
    %v221 = vpop.f32.mrb[0].mxu0
    %222 = vmatprep.mubr.f32.mxu0 0.0
    %223 = vmatmul.mubr.f32.gmra.mrb[0].mxu0 %v57
    %v224 = vpop.f32.mrb[0].mxu0
    %v225 = vadd.f32 0.0, %v224
    %v226 = vpop.f32.mrb[0].mxu0
    %227 = vmatprep.mubr.f32.mxu0 0.0
    %228 = vmatmul.mubr.f32.gmra.mrb[0].mxu0 %v60
    %v229 = vpop.f32.mrb[0].mxu0
    %v230 = vadd.f32 0.0, %v229
    %v231 = vpop.f32.mrb[0].mxu0
    %232 = vmatprep.mubr.f32.mxu0 0.0
    %233 = vmatmul.mubr.f32.gmra.mrb[0].mxu0 %v63
    %v234 = vpop.f32.mrb[0].mxu0
    %v235 = vadd.f32 0.0, %v234
    %v236 = vpop.f32.mrb[0].mxu0
    %237 = vmatprep.mubr.f32.mxu0 0.0
    %238 = vmatmul.mubr.f32.gmra.mrb[0].mxu0 %v66
    %v239 = vpop.f32.mrb[0].mxu0
    %v240 = vadd.f32 0.0, %v239
    %v241 = vpop.f32.mrb[0].mxu0
    %242 = vmatprep.mubr.f32.mxu0 0.0
    %243 = vmatmul.mubr.f32.gmra.mrb[0].mxu0 %v69
    %v244 = vpop.f32.mrb[0].mxu0
    %v245 = vadd.f32 0.0, %v244
    %v246 = vpop.f32.mrb[0].mxu0
    %247 = vmatprep.mubr.f32.mxu0 0.0
    %248 = vmatmul.mubr.f32.gmra.mrb[0].mxu0 %v72
    %v249 = vpop.f32.mrb[0].mxu0
    %v250 = vadd.f32 0.0, %v249
    %v251 = vpop.f32.mrb[0].mxu0
    %252 = vmatprep.mubr.f32.mxu0 0.0
    %253 = vmatmul.mubr.f32.gmra.mrb[0].mxu0 %v75
    %v254 = vpop.f32.mrb[0].mxu0
    %v255 = vadd.f32 0.0, %v254
    %v256 = vpop.f32.mrb[0].mxu0
    %257 = vmatprep.mubr.f32.mxu0 0.0
    %258 = vmatmul.mubr.f32.gmra.mrb[0].mxu0 %v78
    %v259 = vpop.f32.mrb[0].mxu0
    %v260 = vadd.f32 0.0, %v259
    %v261 = vpop.f32.mrb[0].mxu0
    %262 = vmatprep.mubr.f32.mxu0 0.0
    %263 = vmatmul.mubr.f32.gmra.mrb[0].mxu0 %v81
    %v264 = vpop.f32.mrb[0].mxu0
    %v265 = vadd.f32 0.0, %v264
    %v266 = vpop.f32.mrb[0].mxu0
    %267 = vmatprep.mubr.f32.mxu0 0.0
    %268 = vmatmul.mubr.f32.gmra.mrb[0].mxu0 %v84
    %v269 = vpop.f32.mrb[0].mxu0
    %v270 = vadd.f32 0.0, %v269
    %v271 = vpop.f32.mrb[0].mxu0
    %272 = vmatprep.mubr.f32.mxu0 0.0
    %273 = vmatmul.mubr.f32.gmra.mrb[0].mxu0 %v87
    %v274 = vpop.f32.mrb[0].mxu0
    %v275 = vadd.f32 0.0, %v274
    %v276 = vpop.f32.mrb[0].mxu0
    %277 = vmatprep.mubr.f32.mxu0 0.0
    %278 = vmatmul.mubr.f32.gmra.mrb[0].mxu0 %v90
    %v279 = vpop.f32.mrb[0].mxu0
    %v280 = vadd.f32 0.0, %v279
    %v281 = vpop.f32.mrb[0].mxu0
    %282 = vmatprep.mubr.f32.mxu0 0.0
    %283 = vmatmul.mubr.f32.gmra.mrb[0].mxu0 %v93
    %v284 = vpop.f32.mrb[0].mxu0
    %v285 = vadd.f32 0.0, %v284
    %v286 = vpop.f32.mrb[0].mxu0
    %287 = vdwg.mxu0
    %v288 = vmul.f32 %v210, 0.5
    %v289 = vmul.f32 %v215, 0.5
    %v290 = vmul.f32 %v220, 0.5
    %v291 = vmul.f32 %v225, 0.5
    %v292 = vmul.f32 %v230, 0.5
    %v293 = vmul.f32 %v235, 0.5
    %v294 = vmul.f32 %v240, 0.5
    %v295 = vmul.f32 %v245, 0.5
    %v296 = vmul.f32 %v250, 0.5
    %v297 = vmul.f32 %v255, 0.5
    %v298 = vmul.f32 %v260, 0.5
    %v299 = vmul.f32 %v265, 0.5
    %v300 = vmul.f32 %v270, 0.5
    %v301 = vmul.f32 %v275, 0.5
    %v302 = vmul.f32 %v280, 0.5
    %v303 = vmul.f32 %v285, 0.5
    %v304 = vtanh.pop %v288
    %v305 = vtanh.pop %v289
    %v306 = vtanh.pop %v290
    %v307 = vtanh.pop %v291
    %v308 = vtanh.pop %v292
    %v309 = vtanh.pop %v293
    %v310 = vtanh.pop %v294
    %v311 = vtanh.pop %v295
    %v312 = vtanh.pop %v296
    %v313 = vtanh.pop %v297
    %v314 = vtanh.pop %v298
    %v315 = vtanh.pop %v299
    %v316 = vtanh.pop %v300
    %v317 = vtanh.pop %v301
    %v318 = vtanh.pop %v302
    %v319 = vtanh.pop %v303
    %v320 = vadd.f32 %v304, 1.0
    %v321 = vadd.f32 %v305, 1.0
    %v322 = vadd.f32 %v306, 1.0
    %v323 = vadd.f32 %v307, 1.0
    %v324 = vadd.f32 %v308, 1.0
    %v325 = vadd.f32 %v309, 1.0
    %v326 = vadd.f32 %v310, 1.0
    %v327 = vadd.f32 %v311, 1.0
    %v328 = vadd.f32 %v312, 1.0
    %v329 = vadd.f32 %v313, 1.0
    %v330 = vadd.f32 %v314, 1.0
    %v331 = vadd.f32 %v315, 1.0
    %v332 = vadd.f32 %v316, 1.0
    %v333 = vadd.f32 %v317, 1.0
    %v334 = vadd.f32 %v318, 1.0
    %v335 = vadd.f32 %v319, 1.0
    %v336 = vmul.f32 %v320, 0.5
    %v337 = vmul.f32 %v321, 0.5
    %v338 = vmul.f32 %v322, 0.5
    %v339 = vmul.f32 %v323, 0.5
    %v340 = vmul.f32 %v324, 0.5
    %v341 = vmul.f32 %v325, 0.5
    %v342 = vmul.f32 %v326, 0.5
    %v343 = vmul.f32 %v327, 0.5
    %v344 = vmul.f32 %v328, 0.5
    %v345 = vmul.f32 %v329, 0.5
    %v346 = vmul.f32 %v330, 0.5
    %v347 = vmul.f32 %v331, 0.5
    %v348 = vmul.f32 %v332, 0.5
    %v349 = vmul.f32 %v333, 0.5
    %v350 = vmul.f32 %v334, 0.5
    %v351 = vmul.f32 %v335, 0.5
    %352 = vst [vmem:[#allocation2] sm:$0xff] %v336
    %353 = vst [vmem:[#allocation2 + $0x8] sm:$0xff] %v337
    %354 = vst [vmem:[#allocation2 + $0x10] sm:$0xff] %v338
    %355 = vst [vmem:[#allocation2 + $0x18] sm:$0xff] %v339
    %356 = vst [vmem:[#allocation2 + $0x20] sm:$0xff] %v340
    %357 = vst [vmem:[#allocation2 + $0x28] sm:$0xff] %v341
    %358 = vst [vmem:[#allocation2 + $0x30] sm:$0xff] %v342
    %359 = vst [vmem:[#allocation2 + $0x38] sm:$0xff] %v343
    %360 = vst [vmem:[#allocation2 + $0x40] sm:$0xff] %v344
    %361 = vst [vmem:[#allocation2 + $0x48] sm:$0xff] %v345
    %362 = vst [vmem:[#allocation2 + $0x50] sm:$0xff] %v346
    %363 = vst [vmem:[#allocation2 + $0x58] sm:$0xff] %v347
    %364 = vst [vmem:[#allocation2 + $0x60] sm:$0xff] %v348
    %365 = vst [vmem:[#allocation2 + $0x68] sm:$0xff] %v349
    %366 = vst [vmem:[#allocation2 + $0x70] sm:$0xff] %v350
    %367 = vst [vmem:[#allocation2 + $0x78] sm:$0xff] %v351
    // Predicated region
    $region10: #{tpu_custom_call.1} parent=1 // pred_check
      _
    $region11: #{tpu_custom_call.1} parent=1 // pred_check_branch
      %369 = sbr.rel (0) target = $region13
    $region12: #{tpu_custom_call.1} parent=1 // pred_region
      %s371 = ssub.s32 2048, 2048
      %372 = vsyncadd [#allocation3], %s371
      %s373 = sshll.u32 [#allocation2], 4
      %s374 = int_to_ptr.vmem [resolvable:$true] %s373
      %379 = dma.vmem_to_hbm [thread:$0]  %s374, 2048, %s2, [#allocation3], 128, 128, 8
    $region13: #{tpu_custom_call.1} parent=1 // pred_fallthru
      _
    // Predicated region
    $region14: #{tpu_custom_call.1} parent=1 // pred_check
      _
    $region15: #{tpu_custom_call.1} parent=1 // pred_check_branch
      %381 = sbr.rel (0) target = $region17
    $region16: #{tpu_custom_call.1} parent=1 // pred_region
      %382 = dma.done [#allocation3], 2048
    $region17: #{tpu_custom_call.1} parent=1 // pred_fallthru
      _
    %383 = vsyncpa [#allocation3], 1

</llo_original>
